<compile_context>
chip_gen: v5e
topology: v5e:2x2
jax: 0.10.0
libtpu: 0.0.40
codegen_flags: <defaults>
</compile_context>

<pallas_src>
import jax
import jax.numpy as jnp
from jax.experimental import pallas as pl
from jax.experimental.pallas import tpu as pltpu


# ---------------------------------------------------------------------------
# Pass 1: squeeze (spatial sum accumulated over spatial tiles) + excite
#         (tiny MLP, evaluated only at the last spatial tile of each batch
#         block).  Output: per-channel sigmoid gates, (N, C) float32.
# ---------------------------------------------------------------------------
def pool_excite_kernel(x_ref, w1t_ref, b1_ref, w2t_ref, b2_ref, g_ref, acc_ref):
    t = pl.program_id(1)

    @pl.when(t == 0)
    def _():
        acc_ref[...] = jnp.zeros_like(acc_ref)

    # Partial spatial sum of this (Nb, C, T) tile, accumulated in f32.
    acc_ref[...] += jnp.sum(x_ref[...].astype(jnp.float32), axis=-1)

    @pl.when(t == pl.num_programs(1) - 1)
    def _():
        # 1/HW is folded into w1t, so acc effectively becomes the spatial mean.
        h = jnp.dot(acc_ref[...], w1t_ref[...],
                    preferred_element_type=jnp.float32) + b1_ref[...]
        h = jnp.maximum(h, 0.0)
        s = jnp.dot(h, w2t_ref[...],
                    preferred_element_type=jnp.float32) + b2_ref[...]
        g_ref[...] = jax.nn.sigmoid(s)


# ---------------------------------------------------------------------------
# Pass 2: scale.  Memory-bound broadcast multiply in the input dtype.
# ---------------------------------------------------------------------------
def scale_kernel(g_ref, x_ref, o_ref):
    g = g_ref[...].astype(o_ref.dtype)            # (Nb, C) gate, cast once
    o_ref[...] = x_ref[...] * g[:, :, None]       # native-dtype multiply


def _pick_spatial_tile(hw, c, itemsize, max_block_bytes=4 * 1024 * 1024):
    """Largest lane-dense (multiple-of-128) tile dividing HW with a (1,C,T)
    block under the byte cap; fall back to the full spatial extent."""
    for t in (1024, 512, 256, 128):
        if hw % t == 0 and c * t * itemsize <= max_block_bytes:
            return t
    return hw


def _pick_batch_block(n, c, t, itemsize, max_block_bytes=4 * 1024 * 1024):
    """Largest divisor of N whose (Nb, C, T) block stays under the byte cap."""
    for nb in range(n, 0, -1):
        if n % nb == 0 and nb * c * t * itemsize <= max_block_bytes:
            return nb
    return 1


def se_forward(x_nchw, w1, b1, w2, b2):
    """x_nchw: (N, C, H, W).  w1: (S, C), b1: (S,), w2: (C, S), b2: (C,)."""
    N, C, H, W = x_nchw.shape
    S = w1.shape[0]
    HW = H * W
    dt = x_nchw.dtype
    itemsize = jnp.dtype(dt).itemsize

    T = _pick_spatial_tile(HW, C, itemsize)
    Nb = _pick_batch_block(N, C, T, itemsize)
    n_tiles = N // Nb
    t_tiles = HW // T

    x_flat = x_nchw.reshape(N, C, HW)

    # Pre-transpose weights once (no in-kernel .T); fold 1/HW into w1.
    w1t = (w1.astype(jnp.float32) / float(HW)).T          # (C, S)
    w2t = w2.astype(jnp.float32).T                        # (S, C)
    b1_2d = b1.astype(jnp.float32).reshape(1, S)
    b2_2d = b2.astype(jnp.float32).reshape(1, C)

    x_bytes = N * C * HW * itemsize
    g_bytes = N * C * 4

    # -------- pass 1: pooled sums + gates --------
    gates = pl.pallas_call(
        pool_excite_kernel,
        out_shape=jax.ShapeDtypeStruct((N, C), jnp.float32),
        grid_spec=pltpu.PrefetchScalarGridSpec(
            num_scalar_prefetch=0,
            grid=(n_tiles, t_tiles),                       # reduction axis last
            in_specs=[
                pl.BlockSpec((Nb, C, T), lambda n, t: (n, 0, t)),   # x
                pl.BlockSpec((C, S), lambda n, t: (0, 0)),          # w1.T / HW
                pl.BlockSpec((1, S), lambda n, t: (0, 0)),          # b1
                pl.BlockSpec((S, C), lambda n, t: (0, 0)),          # w2.T
                pl.BlockSpec((1, C), lambda n, t: (0, 0)),          # b2
            ],
            out_specs=pl.BlockSpec((Nb, C), lambda n, t: (n, 0)),
            scratch_shapes=[pltpu.VMEM((Nb, C), jnp.float32)],
        ),
        compiler_params=pltpu.CompilerParams(
            dimension_semantics=("parallel", "arbitrary")),
        cost_estimate=pl.CostEstimate(
            flops=N * C * HW + 2 * N * C * S,
            transcendentals=N * C,
            bytes_accessed=x_bytes + g_bytes),
    )(x_flat, w1t, b1_2d, w2t, b2_2d)

    # -------- pass 2: broadcast scale (HBM-roofline bound) --------
    out_flat = pl.pallas_call(
        scale_kernel,
        out_shape=jax.ShapeDtypeStruct((N, C, HW), dt),
        grid_spec=pltpu.PrefetchScalarGridSpec(
            num_scalar_prefetch=0,
            grid=(n_tiles, t_tiles),
            in_specs=[
                pl.BlockSpec((Nb, C), lambda n, t: (n, 0)),         # gates
                pl.BlockSpec((Nb, C, T), lambda n, t: (n, 0, t)),   # x
            ],
            out_specs=pl.BlockSpec((Nb, C, T), lambda n, t: (n, 0, t)),
        ),
        compiler_params=pltpu.CompilerParams(
            dimension_semantics=("parallel", "parallel")),
        cost_estimate=pl.CostEstimate(
            flops=N * C * HW,
            transcendentals=0,
            bytes_accessed=2 * x_bytes + g_bytes),
    )(gates, x_flat)

    return out_flat.reshape(N, C, H, W)


def se_reference(x_nchw, w1, b1, w2, b2):
    """Plain-JAX reference matching the PyTorch SE forward."""
    pooled = jnp.mean(x_nchw, axis=(2, 3))                 # (N, C)
    h = jnp.maximum(pooled @ w1.T + b1, 0.0)               # (N, S)
    s = jax.nn.sigmoid(h @ w2.T + b2)                      # (N, C)
    return x_nchw * s[:, :, None, None]


if __name__ == "__main__":
    # Small shapes consistent with the module: N=2, w_in=4, H=W=16, w_se=2.
    N, C, H, W = 2, 4, 16, 16
    S = 2  # w_se

    key = jax.random.PRNGKey(0)
    kx, k1, k2, k3, k4 = jax.random.split(key, 5)

    x = jax.random.normal(kx, (N, C, H, W), dtype=jnp.float32)
    w1 = jax.random.normal(k1, (S, C), dtype=jnp.float32) * 0.5
    b1 = jax.random.normal(k2, (S,), dtype=jnp.float32) * 0.1
    w2 = jax.random.normal(k3, (C, S), dtype=jnp.float32) * 0.5
    b2 = jax.random.normal(k4, (C,), dtype=jnp.float32) * 0.1

    out = se_forward(x, w1, b1, w2, b2)
    out = jax.block_until_ready(out)

    ref = se_reference(x, w1, b1, w2, b2)
    assert out.shape == (N, C, H, W)
    assert jnp.allclose(out, ref, atol=1e-5, rtol=1e-5), "mismatch vs reference"

    print("KERNEL_OK")
</pallas_src>

<mosaic_0001>
module attributes {stable_mosaic.version = 11 : i64} {
  func.func @pool_excite_kernel(%arg0: i32, %arg1: i32, %arg2: memref<2x4x256xf32, #tpu.memory_space<vmem>>, %arg3: memref<4x2xf32, #tpu.memory_space<vmem>>, %arg4: memref<1x2xf32, #tpu.memory_space<vmem>>, %arg5: memref<2x4xf32, #tpu.memory_space<vmem>>, %arg6: memref<1x4xf32, #tpu.memory_space<vmem>>, %arg7: memref<2x4xf32, #tpu.memory_space<vmem>>, %arg8: memref<2x4xf32, #tpu.memory_space<vmem>>) attributes {dimension_semantics = [#tpu.dimension_semantics<parallel>, #tpu.dimension_semantics<arbitrary>], iteration_bounds = array<i64: 1, 1>, scalar_prefetch = 0 : i64, scratch_operands = 1 : i64, tpu.core_type = #tpu.core_type<tc>, window_params = [{transform_indices = @transform_0, window_bounds = array<i64: 2, 4, 256>}, {pipeline_mode = #tpu.pipeline_mode<synchronous>, transform_indices = @transform_1, window_bounds = array<i64: 4, 2>}, {pipeline_mode = #tpu.pipeline_mode<synchronous>, transform_indices = @transform_2, window_bounds = array<i64: 1, 2>}, {pipeline_mode = #tpu.pipeline_mode<synchronous>, transform_indices = @transform_3, window_bounds = array<i64: 2, 4>}, {pipeline_mode = #tpu.pipeline_mode<synchronous>, transform_indices = @transform_4, window_bounds = array<i64: 1, 4>}, {transform_indices = @transform_5, window_bounds = array<i64: 2, 4>}]} {
    %c0_i32 = arith.constant 0 : i32
    %0 = arith.cmpi eq, %arg1, %c0_i32 : i32
    %1 = arith.extui %0 : i1 to i32
    %c0_i32_0 = arith.constant 0 : i32
    %2 = arith.cmpi ne, %1, %c0_i32_0 : i32
    scf.if %2 {
      %cst_9 = arith.constant 0.000000e+00 : f32
      %11 = vector.broadcast %cst_9 : f32 to vector<2x4xf32>
      %c0_10 = arith.constant 0 : index
      %c0_11 = arith.constant 0 : index
      %12 = vector.load %arg8[%c0_10, %c0_11] : memref<2x4xf32, #tpu.memory_space<vmem>>, vector<2x4xf32>
      tpu.vector_store %arg8[%c0_10, %c0_11], %11 {strides = array<i32>} : memref<2x4xf32, #tpu.memory_space<vmem>>, vector<2x4xf32>,
    } else {
    }
    %c0 = arith.constant 0 : index
    %c0_1 = arith.constant 0 : index
    %3 = vector.load %arg8[%c0, %c0_1] : memref<2x4xf32, #tpu.memory_space<vmem>>, vector<2x4xf32>
    %c0_2 = arith.constant 0 : index
    %c0_3 = arith.constant 0 : index
    %c0_4 = arith.constant 0 : index
    %4 = vector.load %arg2[%c0_2, %c0_3, %c0_4] : memref<2x4x256xf32, #tpu.memory_space<vmem>>, vector<2x4x256xf32>
    %cst = arith.constant dense<0.000000e+00> : vector<2x4xf32>
    %5 = vector.multi_reduction <add>, %4, %cst [2] : vector<2x4x256xf32> to vector<2x4xf32>
    %6 = arith.addf %3, %5 : vector<2x4xf32>
    %c0_5 = arith.constant 0 : index
    %c0_6 = arith.constant 0 : index
    %7 = vector.load %arg8[%c0_5, %c0_6] : memref<2x4xf32, #tpu.memory_space<vmem>>, vector<2x4xf32>
    tpu.vector_store %arg8[%c0_5, %c0_6], %6 {strides = array<i32>} : memref<2x4xf32, #tpu.memory_space<vmem>>, vector<2x4xf32>,
    %c0_i32_7 = arith.constant 0 : i32
    %8 = arith.cmpi eq, %arg1, %c0_i32_7 : i32
    %9 = arith.extui %8 : i1 to i32
    %c0_i32_8 = arith.constant 0 : i32
    %10 = arith.cmpi ne, %9, %c0_i32_8 : i32
    scf.if %10 {
      %c0_9 = arith.constant 0 : index
      %c0_10 = arith.constant 0 : index
      %11 = vector.load %arg8[%c0_9, %c0_10] : memref<2x4xf32, #tpu.memory_space<vmem>>, vector<2x4xf32>
      %c0_11 = arith.constant 0 : index
      %c0_12 = arith.constant 0 : index
      %12 = vector.load %arg3[%c0_11, %c0_12] : memref<4x2xf32, #tpu.memory_space<vmem>>, vector<4x2xf32>
      %cst_13 = arith.constant dense<0.000000e+00> : vector<2x2xf32>
      %13 = tpu.matmul %11, %12, %cst_13 {dimension_numbers = #tpu.dot_dimension_numbers<[1], [0], [0], [1], [0, 0, 1, 1], [], []>} : vector<2x4xf32>, vector<4x2xf32>, vector<2x2xf32> -> vector<2x2xf32>
      %c0_14 = arith.constant 0 : index
      %c0_15 = arith.constant 0 : index
      %14 = vector.load %arg4[%c0_14, %c0_15] : memref<1x2xf32, #tpu.memory_space<vmem>>, vector<1x2xf32>
      %15 = vector.broadcast %14 : vector<1x2xf32> to vector<2x2xf32>
      %16 = arith.addf %13, %15 : vector<2x2xf32>
      %cst_16 = arith.constant 0.000000e+00 : f32
      %17 = vector.broadcast %cst_16 : f32 to vector<2x2xf32>
      %18 = arith.maximumf %16, %17 : vector<2x2xf32>
      %c0_17 = arith.constant 0 : index
      %c0_18 = arith.constant 0 : index
      %19 = vector.load %arg5[%c0_17, %c0_18] : memref<2x4xf32, #tpu.memory_space<vmem>>, vector<2x4xf32>
      %cst_19 = arith.constant dense<0.000000e+00> : vector<2x4xf32>
      %20 = tpu.matmul %18, %19, %cst_19 {dimension_numbers = #tpu.dot_dimension_numbers<[1], [0], [0], [1], [0, 0, 1, 1], [], []>} : vector<2x2xf32>, vector<2x4xf32>, vector<2x4xf32> -> vector<2x4xf32>
      %c0_20 = arith.constant 0 : index
      %c0_21 = arith.constant 0 : index
      %21 = vector.load %arg6[%c0_20, %c0_21] : memref<1x4xf32, #tpu.memory_space<vmem>>, vector<1x4xf32>
      %22 = vector.broadcast %21 : vector<1x4xf32> to vector<2x4xf32>
      %23 = arith.addf %20, %22 : vector<2x4xf32>
      %24 = arith.negf %23 : vector<2x4xf32>
      %25 = math.exp %24 : vector<2x4xf32>
      %cst_22 = arith.constant 1.000000e+00 : f32
      %26 = vector.broadcast %cst_22 : f32 to vector<2x4xf32>
      %27 = arith.addf %26, %25 : vector<2x4xf32>
      %28 = arith.divf %26, %27 : vector<2x4xf32>
      %c0_23 = arith.constant 0 : index
      %c0_24 = arith.constant 0 : index
      %29 = vector.load %arg7[%c0_23, %c0_24] : memref<2x4xf32, #tpu.memory_space<vmem>>, vector<2x4xf32>
      tpu.vector_store %arg7[%c0_23, %c0_24], %28 {strides = array<i32>} : memref<2x4xf32, #tpu.memory_space<vmem>>, vector<2x4xf32>,
    } else {
    }
    return
  }
  func.func @transform_0(%arg0: i32, %arg1: i32) -> (i32, i32, i32) {
    %c0_i32 = arith.constant 0 : i32
    %c0_i32_0 = arith.constant 0 : i32
    return %arg0, %c0_i32, %arg1 : i32, i32, i32
  }
  func.func @transform_1(%arg0: i32, %arg1: i32) -> (i32, i32) {
    %c0_i32 = arith.constant 0 : i32
    %c0_i32_0 = arith.constant 0 : i32
    %c0_i32_1 = arith.constant 0 : i32
    return %c0_i32, %c0_i32_0 : i32, i32
  }
  func.func @transform_2(%arg0: i32, %arg1: i32) -> (i32, i32) {
    %c0_i32 = arith.constant 0 : i32
    %c0_i32_0 = arith.constant 0 : i32
    %c0_i32_1 = arith.constant 0 : i32
    return %c0_i32, %c0_i32_0 : i32, i32
  }
  func.func @transform_3(%arg0: i32, %arg1: i32) -> (i32, i32) {
    %c0_i32 = arith.constant 0 : i32
    %c0_i32_0 = arith.constant 0 : i32
    %c0_i32_1 = arith.constant 0 : i32
    return %c0_i32, %c0_i32_0 : i32, i32
  }
  func.func @transform_4(%arg0: i32, %arg1: i32) -> (i32, i32) {
    %c0_i32 = arith.constant 0 : i32
    %c0_i32_0 = arith.constant 0 : i32
    %c0_i32_1 = arith.constant 0 : i32
    return %c0_i32, %c0_i32_0 : i32, i32
  }
  func.func @transform_5(%arg0: i32, %arg1: i32) -> (i32, i32) {
    %c0_i32 = arith.constant 0 : i32
    %c0_i32_0 = arith.constant 0 : i32
    return %arg0, %c0_i32 : i32, i32
  }
}

</mosaic_0001>

<llo_original>
// kernel: tpu_custom_call.1
$region0: #{tpu_custom_call.1}
  #allocation0 [shape = 'u32[]', space=smem, size = 0x4, offset = 0x4, fixed_abs, tag = 'smem constant byte address 0x4 - core index']
  #allocation1 [shape = 'u32[72,128]{1,0:T(1,128)}', space=vmem, size = 0x9000, scoped, tag = 'internal scratch']
  #allocation2 [shape = 'f32[2,4]{1,0:T(2,128)}', space=vmem, size = 0x400, scoped, tag = 'scratch operand']
  %s0 = inlined_call_operand.hbm [shape: f32[2,4,256], index: 0, kind: input, shape index: {}]
  %s1 = inlined_call_operand.vmem [shape: f32[4,2], index: 1, kind: input, shape index: {}]
  %s2 = inlined_call_operand.vmem [shape: f32[1,2], index: 2, kind: input, shape index: {}]
  %s3 = inlined_call_operand.vmem [shape: f32[2,4], index: 3, kind: input, shape index: {}]
  %s4 = inlined_call_operand.vmem [shape: f32[1,4], index: 4, kind: input, shape index: {}]
  %s5 = inlined_call_operand.hbm [shape: f32[2,4], index: 5, kind: output, shape index: {}]
  %s6 = sld [smem:[#allocation0]]
  $region42: #{tpu_custom_call.1} parent=0
    _
  %s8 = ssub.s32 1, %s6
  %s9 = scalar_select 0, %s8, %s6
  $region1: #{tpu_custom_call.1} parent=0
    #allocation3 [shape = 'u8[8192]{0}', space=vmem, size = 0x2000, scoped, tag = 'input window, operand 0, single buffered']
    #allocation4 [shape = 's32[1]{0}', space=sflag, size = 0x4, scoped, tag = 'scoped memory for tpu_custom_call.1']
    #allocation5 [shape = 's32[1]{0}', space=sflag, size = 0x4, scoped, tag = 'scoped memory for tpu_custom_call.1']
    #allocation6 [shape = 'u8[1024]{0}', space=vmem, size = 0x400, scoped, tag = 'output window, operand 0, single buffered']
    %10 = vsyncpa [#allocation4], 0
    %11 = vsyncpa [#allocation5], 0
    // Predicated region
    $region2: #{tpu_custom_call.1} parent=1 // pred_check
      _
    $region3: #{tpu_custom_call.1} parent=1 // pred_check_branch
      %13 = sbr.rel (0) target = $region5
    $region4: #{tpu_custom_call.1} parent=1 // pred_region
      %15 = vsyncadd [#allocation4], 0
      %s16 = sshll.u32 %s0, 4
      %s17 = int_to_ptr.hbm [resolvable:$true] %s16
      %s18 = sshll.u32 [#allocation3], 4
      %s19 = int_to_ptr.vmem [resolvable:$true] %s18
      %24 = dma.hbm_to_vmem [thread:$0]  %s17, 256, %s19, [#allocation4], 128, 128, 8
    $region5: #{tpu_custom_call.1} parent=1 // pred_fallthru
      _
    // Predicated region
    $region6: #{tpu_custom_call.1} parent=1 // pred_check
      _
    $region7: #{tpu_custom_call.1} parent=1 // pred_check_branch
      %26 = sbr.rel (0) target = $region9
    $region8: #{tpu_custom_call.1} parent=1 // pred_region
      _
    $region9: #{tpu_custom_call.1} parent=1 // pred_fallthru
      _
    // Predicated region
    $region10: #{tpu_custom_call.1} parent=1 // pred_check
      _
    $region11: #{tpu_custom_call.1} parent=1 // pred_check_branch
      %28 = sbr.rel (0) target = $region13
    $region12: #{tpu_custom_call.1} parent=1 // pred_region
      _
    $region13: #{tpu_custom_call.1} parent=1 // pred_fallthru
      _
    // Predicated region
    $region14: #{tpu_custom_call.1} parent=1 // pred_check
      _
    $region15: #{tpu_custom_call.1} parent=1 // pred_check_branch
      %30 = sbr.rel (0) target = $region17
    $region16: #{tpu_custom_call.1} parent=1 // pred_region
      _
    $region17: #{tpu_custom_call.1} parent=1 // pred_fallthru
      _
    // Predicated region
    $region18: #{tpu_custom_call.1} parent=1 // pred_check
      _
    $region19: #{tpu_custom_call.1} parent=1 // pred_check_branch
      %32 = sbr.rel (0) target = $region21
    $region20: #{tpu_custom_call.1} parent=1 // pred_region
      _
    $region21: #{tpu_custom_call.1} parent=1 // pred_fallthru
      _
    // Predicated region
    $region22: #{tpu_custom_call.1} parent=1 // pred_check
      _
    $region23: #{tpu_custom_call.1} parent=1 // pred_check_branch
      %34 = sbr.rel (0) target = $region25
    $region24: #{tpu_custom_call.1} parent=1 // pred_region
      %36 = dma.done [#allocation4], 256
    $region25: #{tpu_custom_call.1} parent=1 // pred_fallthru
      _
    %p37 = scmp.eq.s32.totalorder 0, 0
    // Predicated region
    $region26: #{tpu_custom_call.1} parent=1 // pred_check
      %p38 = pneg %p37
    $region27: #{tpu_custom_call.1} parent=1 // pred_check_branch
      %40 = sbr.rel (%p38) target = $region29
    $region28: #{tpu_custom_call.1} parent=1 // pred_region
      %vm41 = vcmask 25600
      %42 = vst.msk [vmem:[#allocation2] sm:$0x3] %vm41, 0.0
    $region29: #{tpu_custom_call.1} parent=1 // pred_fallthru
      _
    %v43 = vld [vmem:[#allocation2] sm:$0x3]
    %v44 = vld [vmem:[#allocation3] sm:$0xff]
    %v45 = vld [vmem:[#allocation3 + $0x8] sm:$0xff]
    %48 = vst [vmem:[#allocation1] ss:$2 sm:$0xff] %v44
    %v49 = vld.sshfl [vmem:[#allocation1] sm:$0xff pattern:$0x75316420]
    %v50 = vld.sshfl [vmem:[#allocation1 + $0x8] sm:$0xff pattern:$0x75316420]
    %s51 = scalar_lea.vmem [#allocation1], 16
    %52 = vst [vmem:[%s51] ss:$2 sm:$0xff] %v45
    %v53 = vld.sshfl [vmem:[#allocation1 + $0x10] sm:$0xff pattern:$0x75316420]
    %v54 = vld.sshfl [vmem:[#allocation1 + $0x18] sm:$0xff pattern:$0x75316420]
    %vm59 = vcmask 1043456
    %v60 = vsel %vm59, %v49, 0.0
    %v61 = vsel %vm59, %v50, 0.0
    %v62 = vadd.f32 %v60, %v61
    %63 = vadd.xlane.f32.xlu0 %v62
    %v64 = vpop.xlane.xlu0 %63
    %v65 = vsel %vm59, %v53, 0.0
    %v66 = vsel %vm59, %v54, 0.0
    %v67 = vadd.f32 %v65, %v66
    %68 = vadd.xlane.f32.xlu0 %v67
    %v69 = vpop.xlane.xlu0 %68
    %v72 = vlaneseq
    %v73 = vand.u32 %v72, 127
    %v74 = vperm.slane %v64, %v73
    %v75 = vperm.slane %v69, %v73
    %vm76 = vcmask 1041409
    %v77 = vsel %vm76, %v75, %v74
    %v79 = vadd.f32 %v43, %v77
    %vm80 = vcmask 25600
    %81 = vst.msk [vmem:[#allocation2] sm:$0x3] %vm80, %v79
    // Predicated region
    $region30: #{tpu_custom_call.1} parent=1 // pred_check
      %p82 = pneg %p37
    $region31: #{tpu_custom_call.1} parent=1 // pred_check_branch
      %84 = sbr.rel (%p82) target = $region33
    $region32: #{tpu_custom_call.1} parent=1 // pred_region
      %v85 = vld [vmem:[#allocation2] sm:$0x3]
      %v86 = vld [vmem:[%s1] sm:$0xf]
      %v87 = vld [vmem:[%s2] sm:$0x1]
      %v89 = vperm.slane %v87, 0
      %vm91 = vcmask 31744
      %v93 = vsel %vm91, %v85, 0
      %v96 = vsel %vm59, %v86, 0
      %98 = vmatpush.msra.mxu0 0.0
      %99 = vmatpush.msra.mxu0 0.0
      %100 = vmatpush.msra.mxu0 0.0
      %101 = vmatpush.msra.mxu0 0.0
      %102 = vmatpush.msra.mxu0 0.0
      %103 = vmatpush.msra.mxu0 0.0
      %104 = vmatpush.msra.mxu0 0.0
      %105 = vmatpush.msra.mxu0 0.0
      %106 = vmatpush.msra.mxu0 0.0
      %107 = vmatpush.msra.mxu0 0.0
      %108 = vmatpush.msra.mxu0 0.0
      %109 = vmatpush.msra.mxu0 0.0
      %110 = vmatpush.msra.mxu0 0.0
      %111 = vmatpush.msra.mxu0 0.0
      %112 = vmatpush.msra.mxu0 0.0
      %113 = vmatpush.msra.mxu0 %v96
      %114 = vmatmul.f32.gmra.mxu0 %v93
      %v115 = vpop.f32.mrf.mxu0
      %v116 = vadd.f32 %v89, %v115
      %117 = vdwg.mxu0
      %v118 = vmax.f32 %v116, 0.0
      %v119 = vld [vmem:[%s3] sm:$0x3]
      %v120 = vld [vmem:[%s4] sm:$0x1]
      %v122 = vperm.slane %v120, 0
      %vm124 = vcmask 15360
      %v126 = vsel %vm124, %v118, 0
      %vm128 = vcmask 1041408
      %v130 = vsel %vm128, %v119, 0
      %132 = vmatpush.msra.mxu0 0.0
      %133 = vmatpush.msra.mxu0 0.0
      %134 = vmatpush.msra.mxu0 0.0
      %135 = vmatpush.msra.mxu0 0.0
      %136 = vmatpush.msra.mxu0 0.0
      %137 = vmatpush.msra.mxu0 0.0
      %138 = vmatpush.msra.mxu0 0.0
      %139 = vmatpush.msra.mxu0 0.0
      %140 = vmatpush.msra.mxu0 0.0
      %141 = vmatpush.msra.mxu0 0.0
      %142 = vmatpush.msra.mxu0 0.0
      %143 = vmatpush.msra.mxu0 0.0
      %144 = vmatpush.msra.mxu0 0.0
      %145 = vmatpush.msra.mxu0 0.0
      %146 = vmatpush.msra.mxu0 0.0
      %147 = vmatpush.msra.mxu0 %v130
      %148 = vmatmul.f32.gmra.mxu0 %v126
      %v149 = vpop.f32.mrf.mxu0
      %v150 = vadd.f32 %v122, %v149
      %151 = vdwg.mxu0
      %v152 = vxor.u32 %v150, 2147483648
      %v153 = vmul.f32 %v152, 1.442695
      %v154 = vpow.pop %v153
      %v155 = vadd.f32 %v154, 1.0
      %v156 = vrcp.pop %v155
      %v157 = vmul.f32 %v155, %v156
      %v158 = vsub.f32 1.0, %v157
      %v159 = vmul.f32 %v156, %v158
      %v160 = vadd.f32 %v156, %v159
      %vm161 = vweird.f32 %v155
      %vm162 = vweird.f32 %v156
      %vm163 = vmor %vm161, %vm162
      %v164 = vsel %vm163, %v156, %v160
      %v165 = vand.u32 2147483647, %v155
      %vm166 = vcmp.eq.f32.partialorder %v165, 8.507059e+37
      %v167 = vand.u32 %v155, 2147483648
      %v168 = vor.u32 1.1754944e-38, %v167
      %v169 = vsel %vm166, %v168, %v164
      %v170 = vmul.f32 1.0, %v169
      %171 = vst.msk [vmem:[#allocation6] sm:$0x3] %vm80, %v170
    $region33: #{tpu_custom_call.1} parent=1 // pred_fallthru
      _
    // Predicated region
    $region34: #{tpu_custom_call.1} parent=1 // pred_check
      _
    $region35: #{tpu_custom_call.1} parent=1 // pred_check_branch
      %173 = sbr.rel (0) target = $region37
    $region36: #{tpu_custom_call.1} parent=1 // pred_region
      %175 = vsyncadd [#allocation5], 0
      %s177 = sshll.u32 [#allocation6], 4
      %s178 = int_to_ptr.vmem [resolvable:$true] %s177
      %s179 = sshll.u32 %s5, 4
      %s180 = int_to_ptr.hbm [resolvable:$true] %s179
      %182 = dma.vmem_to_hbm [thread:$0]  %s178, 32, %s180, [#allocation5]
    $region37: #{tpu_custom_call.1} parent=1 // pred_fallthru
      _
    // Predicated region
    $region38: #{tpu_custom_call.1} parent=1 // pred_check
      _
    $region39: #{tpu_custom_call.1} parent=1 // pred_check_branch
      %184 = sbr.rel (0) target = $region41
    $region40: #{tpu_custom_call.1} parent=1 // pred_region
      %186 = dma.done [#allocation5], 32
    $region41: #{tpu_custom_call.1} parent=1 // pred_fallthru
      _
    %187 = vsyncpa [#allocation4], 1
    %188 = vsyncpa [#allocation5], 1

</llo_original>
